<compile_context>
chip_gen: v5e
topology: v5e:2x2
jax: 0.10.0
libtpu: 0.0.40
codegen_flags: <defaults>
</compile_context>

<pallas_src>
import jax
import jax.numpy as jnp
from jax import lax
from jax.experimental import pallas as pl
from jax.experimental.pallas import tpu as pltpu


def _round_up(x: int, m: int) -> int:
    return ((x + m - 1) // m) * m


def _cdiv(a: int, b: int) -> int:
    return (a + b - 1) // b


def _vmem_capacity_bytes() -> int:
    """Per-core VMEM capacity; conservative 64 MiB (v7x) fallback."""
    try:
        info = pltpu.get_tpu_info()
        cap = int(getattr(info, "vmem_capacity_bytes", 0) or 0)
        if cap > 0:
            return cap
    except Exception:
        pass
    return 64 * 1024 * 1024


# ---------------------------------------------------------------------------
# Path A: small / moderate vocab -> one-hot MXU matmul, table resident in VMEM
# ---------------------------------------------------------------------------
def _onehot_kernel(ids_ref, table_ref, out_ref):
    # ids_ref  : (T, 1) int32 block in VMEM (per-tile ids as a column vector)
    # table_ref: (V, D) full table; constant index_map -> DMA'd once, resident
    # out_ref  : (T, D) output tile
    T = out_ref.shape[0]
    V = table_ref.shape[0]
    ids = ids_ref[...]                                        # (T, 1)
    iota = lax.broadcasted_iota(jnp.int32, (T, V), 1)         # lane axis = vocab
    one_hot = (iota == ids).astype(table_ref.dtype)           # 0/1 exact in bf16/f32
    out_ref[...] = jnp.dot(
        one_hot, table_ref[...], preferred_element_type=jnp.float32
    ).astype(out_ref.dtype)


# ---------------------------------------------------------------------------
# Path B: large vocab -> table stays in HBM, pipelined per-row DMA gather
# ---------------------------------------------------------------------------
_NBUF = 8  # outstanding row DMAs


def _gather_kernel(ids_ref, table_ref, out_ref, sem):
    # ids_ref  : (T,) int32 SMEM block for this token tile
    # table_ref: (V, D) table left in HBM (memory_space=pl.ANY)
    # out_ref  : (T, D) VMEM output tile; rows are DMA'd straight into it
    # sem      : (_NBUF,) DMA semaphores -> _NBUF gathers in flight
    T = out_ref.shape[0]

    def row_copy(j, slot):
        return pltpu.make_async_copy(
            table_ref.at[pl.ds(ids_ref[j], 1), :],
            out_ref.at[pl.ds(j, 1), :],
            sem.at[slot],
        )

    # Prime the pipeline with _NBUF outstanding row gathers (static loop).
    for j in range(min(_NBUF, T)):
        row_copy(j, j % _NBUF).start()

    def body(j, carry):
        slot = j & (_NBUF - 1)
        row_copy(j, slot).wait()          # row j has landed in out_ref

        @pl.when(j + _NBUF < T)
        def _():
            row_copy(j + _NBUF, slot).start()

        return carry

    # Unrolled so the _NBUF independent DMA chains actually overlap.
    lax.fori_loop(0, T, body, 0, unroll=8)
    # TODO(synk): batch multiple rows per DMA for very small D to amortize
    # descriptor overhead; per-row DMAs are already >=2-8 KB for D >= 512.


# ---------------------------------------------------------------------------
# Wrapper
# ---------------------------------------------------------------------------
def pallas_embedding(ids: jax.Array, weight: jax.Array, *,
                     tile_tokens: int = 256,
                     force_gather: bool = False) -> jax.Array:
    """ids: (B, S) int -> (B, S, D) lookup into weight (V, D)."""
    B, S = ids.shape
    V, D = weight.shape
    n_tok = B * S
    itemsize = jnp.dtype(weight.dtype).itemsize

    # Dtype-specific sublane multiple: f32 -> 8, bf16 -> 16, int8/fp8 -> 32.
    sub = max(8, 32 // itemsize)

    # TODO(synk): nn.Embedding raises on out-of-range ids; we clamp instead
    # (no clean in-kernel error path on TPU).
    ids_flat = jnp.clip(ids.reshape(n_tok).astype(jnp.int32), 0, V - 1)

    cap = _vmem_capacity_bytes()
    budget = int(0.75 * cap)

    # Token tile: start from tile_tokens, keep double-buffered output tiles
    # within ~budget/4 (keeps D=4096 f32 workable on v7x's 64 MiB VMEM).
    T = min(int(tile_tokens), _round_up(n_tok, sub))
    while T > sub and 2 * T * D * itemsize > budget // 4:
        T = max(sub, T // 2)
    T = _round_up(max(T, sub), sub)

    n_tiles = _cdiv(n_tok, T)
    n_pad = n_tiles * T
    if n_pad != n_tok:
        # Only the tiny ids array is padded (pad id 0 -> valid row); the output
        # stays (n_tok, D) and the ragged last block is masked on writeback.
        ids_flat = jnp.pad(ids_flat, (0, n_pad - n_tok))

    table_bytes = V * D * itemsize
    out_tile_bytes = T * D * itemsize
    ids_tile_bytes = T * 128 * 4                 # (T,1) int32 padded to one lane-group
    onehot_tmp = T * _round_up(V, 128) * 4       # one-hot + f32 accumulator temporaries
    # NOTE: BlockSpec inputs are double-buffered, so the resident table is
    # budgeted at 2x even though its constant index_map means a single DMA.
    onehot_needed = (2 * table_bytes + 2 * out_tile_bytes + 2 * ids_tile_bytes
                     + 2 * onehot_tmp + (2 << 20))

    use_onehot = (not force_gather) and (V <= 4096) and (onehot_needed <= budget)

    if use_onehot:
        ids_col = ids_flat.reshape(n_pad, 1)
        vmem_limit = int(min(max(onehot_needed, 32 * 1024 * 1024), budget))
        out_flat = pl.pallas_call(
            _onehot_kernel,
            out_shape=jax.ShapeDtypeStruct((n_tok, D), weight.dtype),
            grid=(n_tiles,),
            in_specs=[
                pl.BlockSpec((T, 1), lambda i: (i, 0)),          # per-tile ids (VMEM)
                pl.BlockSpec((V, D), lambda i: (0, 0)),          # table, resident
            ],
            out_specs=pl.BlockSpec((T, D), lambda i: (i, 0)),
            compiler_params=pltpu.CompilerParams(
                dimension_semantics=("parallel",),
                vmem_limit_bytes=vmem_limit,
            ),
        )(ids_col, weight)
    else:
        gather_needed = 2 * out_tile_bytes + (4 << 20)
        vmem_limit = int(min(max(gather_needed, 32 * 1024 * 1024), budget))
        out_flat = pl.pallas_call(
            _gather_kernel,
            out_shape=jax.ShapeDtypeStruct((n_tok, D), weight.dtype),
            grid=(n_tiles,),
            in_specs=[
                pl.BlockSpec((T,), lambda i: (i,),
                             memory_space=pltpu.MemorySpace.SMEM),  # per-tile ids
                pl.BlockSpec(memory_space=pl.ANY),                  # table stays in HBM
            ],
            out_specs=pl.BlockSpec((T, D), lambda i: (i, 0)),
            scratch_shapes=[pltpu.SemaphoreType.DMA((_NBUF,))],
            compiler_params=pltpu.CompilerParams(
                dimension_semantics=("parallel",),
                vmem_limit_bytes=vmem_limit,
            ),
        )(ids_flat, weight)

    return out_flat.reshape(B, S, D)


def init_embedding_weight(key, vocab_size: int, d_model: int, pad_idx: int = 0):
    # nn.Embedding init ~ N(0, 1); row at padding_idx is zeroed (forward semantics).
    w = jax.random.normal(key, (vocab_size, d_model), dtype=jnp.float32)
    w = w.at[pad_idx].set(0.0)
    return w


if __name__ == "__main__":
    vocab_size = 64
    d_model = 128
    pad_idx = 0
    B, S = 2, 8

    key = jax.random.PRNGKey(0)
    k_w, k_ids, k_ids2 = jax.random.split(key, 3)

    weight = init_embedding_weight(k_w, vocab_size, d_model, pad_idx)
    ids = jax.random.randint(k_ids, (B, S), 0, vocab_size, dtype=jnp.int32)
    ids = ids.at[0, 0].set(pad_idx)   # exercise the zeroed padding row

    ref = jnp.take(weight, ids, axis=0)

    # Path A: one-hot MXU matmul (table resident in VMEM).
    out = jax.block_until_ready(pallas_embedding(ids, weight))
    assert out.shape == (B, S, d_model)
    assert jnp.allclose(out, ref), "one-hot path mismatch vs reference gather"
    assert jnp.allclose(out[0, 0], 0.0), "padding row must be zero"

    # Path B: HBM DMA-gather fallback (forced on the same data).
    out_g = jax.block_until_ready(pallas_embedding(ids, weight, force_gather=True))
    assert jnp.allclose(out_g, ref), "gather path mismatch vs reference gather"

    # Ragged tail: token count not a multiple of the tile (exercises masked
    # last-block writeback on both paths).
    ids2 = jax.random.randint(k_ids2, (3, 7), 0, vocab_size, dtype=jnp.int32)
    ref2 = jnp.take(weight, ids2, axis=0)
    out2 = jax.block_until_ready(pallas_embedding(ids2, weight))
    assert jnp.allclose(out2, ref2), "one-hot ragged mismatch"
    out2g = jax.block_until_ready(pallas_embedding(ids2, weight, force_gather=True))
    assert jnp.allclose(out2g, ref2), "gather ragged mismatch"

    print("KERNEL_OK")
</pallas_src>

<mosaic_0001>
module attributes {stable_mosaic.version = 11 : i64} {
  func.func @_onehot_kernel(%arg0: i32, %arg1: memref<16x1xi32, #tpu.memory_space<vmem>>, %arg2: memref<64x128xf32, #tpu.memory_space<vmem>>, %arg3: memref<16x128xf32, #tpu.memory_space<vmem>>) attributes {dimension_semantics = [#tpu.dimension_semantics<parallel>], iteration_bounds = array<i64: 1>, scalar_prefetch = 0 : i64, scratch_operands = 0 : i64, tpu.core_type = #tpu.core_type<tc>, window_params = [{transform_indices = @transform_0, window_bounds = array<i64: 16, 1>}, {pipeline_mode = #tpu.pipeline_mode<synchronous>, transform_indices = @transform_1, window_bounds = array<i64: 64, 128>}, {transform_indices = @transform_2, window_bounds = array<i64: 16, 128>}]} {
    %c0 = arith.constant 0 : index
    %c0_0 = arith.constant 0 : index
    %0 = vector.load %arg1[%c0, %c0_0] : memref<16x1xi32, #tpu.memory_space<vmem>>, vector<16x1xi32>
    %1 = tpu.iota {dimensions = array<i32: 1>} : vector<16x64xi32>
    %2 = vector.broadcast %0 : vector<16x1xi32> to vector<16x64xi32>
    %3 = arith.cmpi eq, %1, %2 : vector<16x64xi32>
    %4 = arith.extui %3 : vector<16x64xi1> to vector<16x64xi32>
    %5 = arith.sitofp %4 : vector<16x64xi32> to vector<16x64xf32>
    %c0_1 = arith.constant 0 : index
    %c0_2 = arith.constant 0 : index
    %6 = vector.load %arg2[%c0_1, %c0_2] : memref<64x128xf32, #tpu.memory_space<vmem>>, vector<64x128xf32>
    %cst = arith.constant dense<0.000000e+00> : vector<16x128xf32>
    %7 = tpu.matmul %5, %6, %cst {dimension_numbers = #tpu.dot_dimension_numbers<[1], [0], [0], [1], [0, 0, 1, 1], [], []>} : vector<16x64xf32>, vector<64x128xf32>, vector<16x128xf32> -> vector<16x128xf32>
    %c0_3 = arith.constant 0 : index
    %c0_4 = arith.constant 0 : index
    %8 = vector.load %arg3[%c0_3, %c0_4] : memref<16x128xf32, #tpu.memory_space<vmem>>, vector<16x128xf32>
    tpu.vector_store %arg3[%c0_3, %c0_4], %7 {strides = array<i32>} : memref<16x128xf32, #tpu.memory_space<vmem>>, vector<16x128xf32>,
    return
  }
  func.func @transform_0(%arg0: i32) -> (i32, i32) {
    %c0_i32 = arith.constant 0 : i32
    %c0_i32_0 = arith.constant 0 : i32
    return %arg0, %c0_i32 : i32, i32
  }
  func.func @transform_1(%arg0: i32) -> (i32, i32) {
    %c0_i32 = arith.constant 0 : i32
    %c0_i32_0 = arith.constant 0 : i32
    %c0_i32_1 = arith.constant 0 : i32
    return %c0_i32, %c0_i32_0 : i32, i32
  }
  func.func @transform_2(%arg0: i32) -> (i32, i32) {
    %c0_i32 = arith.constant 0 : i32
    %c0_i32_0 = arith.constant 0 : i32
    return %arg0, %c0_i32 : i32, i32
  }
}

</mosaic_0001>

<llo_original>
// kernel: tpu_custom_call.1
$region0: #{tpu_custom_call.1}
  #allocation0 [shape = 'u32[]', space=smem, size = 0x4, offset = 0x4, fixed_abs, tag = 'smem constant byte address 0x4 - core index']
  #allocation1 [shape = 'u32[72,128]{1,0:T(1,128)}', space=vmem, size = 0x9000, scoped, tag = 'internal scratch']
  %s0 = inlined_call_operand.vmem [shape: s32[16,1], index: 0, kind: input, shape index: {}]
  %s1 = inlined_call_operand.hbm [shape: f32[64,128], index: 1, kind: input, shape index: {}]
  %s2 = inlined_call_operand.hbm [shape: f32[16,128], index: 2, kind: output, shape index: {}]
  %s3 = sld [smem:[#allocation0]]
  $region22: #{tpu_custom_call.1} parent=0
    _
  %s5 = ssub.s32 1, %s3
  %s6 = scalar_select 0, %s5, %s3
  $region1: #{tpu_custom_call.1} parent=0
    #allocation2 [shape = 'u8[32768]{0}', space=vmem, size = 0x8000, scoped, tag = 'input window, operand 1, single buffered']
    #allocation3 [shape = 's32[1]{0}', space=sflag, size = 0x4, scoped, tag = 'scoped memory for tpu_custom_call.1']
    #allocation4 [shape = 's32[1]{0}', space=sflag, size = 0x4, scoped, tag = 'scoped memory for tpu_custom_call.1']
    #allocation5 [shape = 'u8[8192]{0}', space=vmem, size = 0x2000, scoped, tag = 'output window, operand 0, single buffered']
    %7 = vsyncpa [#allocation3], 0
    %8 = vsyncpa [#allocation4], 0
    // Predicated region
    $region2: #{tpu_custom_call.1} parent=1 // pred_check
      _
    $region3: #{tpu_custom_call.1} parent=1 // pred_check_branch
      %10 = sbr.rel (0) target = $region5
    $region4: #{tpu_custom_call.1} parent=1 // pred_region
      _
    $region5: #{tpu_custom_call.1} parent=1 // pred_fallthru
      _
    // Predicated region
    $region6: #{tpu_custom_call.1} parent=1 // pred_check
      _
    $region7: #{tpu_custom_call.1} parent=1 // pred_check_branch
      %12 = sbr.rel (0) target = $region9
    $region8: #{tpu_custom_call.1} parent=1 // pred_region
      %14 = vsyncadd [#allocation3], 0
      %s15 = sshll.u32 %s1, 4
      %s16 = int_to_ptr.hbm [resolvable:$true] %s15
      %s17 = sshll.u32 [#allocation2], 4
      %s18 = int_to_ptr.vmem [resolvable:$true] %s17
      %23 = dma.hbm_to_vmem [thread:$0]  %s16, 1024, %s18, [#allocation3], 128, 128, 8
    $region9: #{tpu_custom_call.1} parent=1 // pred_fallthru
      _
    // Predicated region
    $region10: #{tpu_custom_call.1} parent=1 // pred_check
      _
    $region11: #{tpu_custom_call.1} parent=1 // pred_check_branch
      %25 = sbr.rel (0) target = $region13
    $region12: #{tpu_custom_call.1} parent=1 // pred_region
      %27 = dma.done [#allocation3], 1024
    $region13: #{tpu_custom_call.1} parent=1 // pred_fallthru
      _
    %v28 = vld [vmem:[%s0] sm:$0xff]
    %v29 = vld [vmem:[%s0 + $0x8] sm:$0xff]
    %v30 = vlaneseq
    %v31 = vand.u32 %v30, 127
    %32 = vset.pattern.permute.xlu0 0
    %33 = vperm.xlu0 %32, %v28
    %v34 = vpop.permute.xlu0 %33
    %35 = vset.pattern.permute.xlu0 0
    %36 = vperm.xlu0 %35, %v29
    %v37 = vpop.permute.xlu0 %36
    %vm38 = vcmp.eq.s32.totalorder %v31, %v34
    %vm39 = vcmp.eq.s32.totalorder %v31, %v37
    %v40 = vsel %vm38, 1, 0
    %v41 = vsel %vm39, 1, 0
    %v42 = vcvt.s32.f32 %v40
    %v43 = vcvt.s32.f32 %v41
    %v44 = vld [vmem:[#allocation2] sm:$0xff]
    %v45 = vld [vmem:[#allocation2 + $0x8] sm:$0xff]
    %v46 = vld [vmem:[#allocation2 + $0x10] sm:$0xff]
    %v47 = vld [vmem:[#allocation2 + $0x18] sm:$0xff]
    %v48 = vld [vmem:[#allocation2 + $0x20] sm:$0xff]
    %v49 = vld [vmem:[#allocation2 + $0x28] sm:$0xff]
    %v50 = vld [vmem:[#allocation2 + $0x30] sm:$0xff]
    %v51 = vld [vmem:[#allocation2 + $0x38] sm:$0xff]
    %vm52 = vcmask 523264
    %v54 = vsel %vm52, %v42, 0
    %v57 = vsel %vm52, %v43, 0
    %59 = vmatpush.msra.mxu0 0.0
    %60 = vmatpush.msra.mxu0 0.0
    %61 = vmatpush.msra.mxu0 0.0
    %62 = vmatpush.msra.mxu0 0.0
    %63 = vmatpush.msra.mxu0 0.0
    %64 = vmatpush.msra.mxu0 0.0
    %65 = vmatpush.msra.mxu0 0.0
    %66 = vmatpush.msra.mxu0 0.0
    %67 = vmatpush.msra.mxu0 %v51
    %68 = vmatpush.msra.mxu0 %v50
    %69 = vmatpush.msra.mxu0 %v49
    %70 = vmatpush.msra.mxu0 %v48
    %71 = vmatpush.msra.mxu0 %v47
    %72 = vmatpush.msra.mxu0 %v46
    %73 = vmatpush.msra.mxu0 %v45
    %74 = vmatpush.msra.mxu0 %v44
    %75 = vmatmul.f32.gmra.mxu0 %v54
    %v76 = vpop.f32.mrf.mxu0
    %v77 = vadd.f32 0.0, %v76
    %78 = vmatmul.f32.gmra.mxu0 %v57
    %v79 = vpop.f32.mrf.mxu0
    %v80 = vadd.f32 0.0, %v79
    %81 = vdwg.mxu0
    %82 = vst [vmem:[#allocation5] sm:$0xff] %v77
    %83 = vst [vmem:[#allocation5 + $0x8] sm:$0xff] %v80
    // Predicated region
    $region14: #{tpu_custom_call.1} parent=1 // pred_check
      _
    $region15: #{tpu_custom_call.1} parent=1 // pred_check_branch
      %85 = sbr.rel (0) target = $region17
    $region16: #{tpu_custom_call.1} parent=1 // pred_region
      %87 = vsyncadd [#allocation4], 0
      %s88 = sshll.u32 [#allocation5], 4
      %s89 = int_to_ptr.vmem [resolvable:$true] %s88
      %s90 = sshll.u32 %s2, 4
      %s91 = int_to_ptr.hbm [resolvable:$true] %s90
      %96 = dma.vmem_to_hbm [thread:$0]  %s89, 256, %s91, [#allocation4], 128, 128, 8
    $region17: #{tpu_custom_call.1} parent=1 // pred_fallthru
      _
    // Predicated region
    $region18: #{tpu_custom_call.1} parent=1 // pred_check
      _
    $region19: #{tpu_custom_call.1} parent=1 // pred_check_branch
      %98 = sbr.rel (0) target = $region21
    $region20: #{tpu_custom_call.1} parent=1 // pred_region
      %100 = dma.done [#allocation4], 256
    $region21: #{tpu_custom_call.1} parent=1 // pred_fallthru
      _
    %101 = vsyncpa [#allocation3], 1
    %102 = vsyncpa [#allocation4], 1

</llo_original>
